<compile_context>
chip_gen: v7x
topology: tpu7x:2x2x1
jax: 0.10.0
libtpu: 0.0.40
codegen_flags: <defaults>
</compile_context>

<pallas_src>
import functools

import jax
import jax.numpy as jnp
from jax import lax
from jax.experimental import pallas as pl
from jax.experimental.pallas import tpu as pltpu

IN_CH = 8      # GCND2 in_channels
HID = 16       # g1 out / stage width
INNER = 32     # GCNRes inner width (2 * 16)
OUT_CH = 1     # header out_channels
LANE = 128

# Packed parameter layout: single f32 [P_ROWS, P_COLS] array.
# Per folded GCNConv+BN layer (spec = (row0, Cout, Cin)):
#   rows [row0, row0+Cout), cols [0, Cin)      = W^T with BN scale folded in
#   rows [row0, row0+Cout), col  Cin           = BN shift (column vector)
_L1 = (0, HID, IN_CH)        # g1        8 -> 16
_L2A = (16, INNER, HID)      # stage1.g1 16 -> 32
_L2B = (48, HID, INNER)      # stage1.g2 32 -> 16
_L3A = (64, INNER, HID)      # stage2.g1 16 -> 32
_L3B = (96, HID, INNER)      # stage2.g2 32 -> 16
_WH_COL = 40                 # header weight as a [16,1] column (rows 0:16)
_BH_COL = 41                 # header bias at [0:1, _BH_COL]
P_ROWS = 112                 # 16+32+16+32+16
P_COLS = LANE


def _gcnd2_kernel(zt_ref, at_ref, p_ref, o_ref):
    """Fused GCND2 forward (feature-major).

    zt_ref : [IN_CH, N]  bf16 node features, transposed (nodes on lanes)
    at_ref : [N, N]      bf16 normalized adjacency A_hat (symmetric)
    p_ref  : [112, 128]  f32 packed weights / BN shifts / header params
    o_ref  : [1, N]      f32 sigmoid output (lane-dense)
    """
    at = at_ref[...]           # hoisted: one load shared by all 6 propagations
    z = zt_ref[...]            # [IN_CH, N] bf16

    def wt(spec):
        r0, cout, cin = spec
        return (p_ref[r0:r0 + cout, 0:cin],          # folded weight [Cout, Cin]
                p_ref[r0:r0 + cout, cin:cin + 1])    # BN shift      [Cout, 1]

    w1, t1 = wt(_L1)
    w2a, t2a = wt(_L2A)
    w2b, t2b = wt(_L2B)
    w3a, t3a = wt(_L3A)
    w3b, t3b = wt(_L3B)
    wh = p_ref[0:HID, _WH_COL:_WH_COL + 1]           # [16, 1] header weight
    bh = p_ref[0:1, _BH_COL:_BH_COL + 1]             # [1, 1]  header bias

    def prop(lhs):
        # The N^2 matmul: bf16 operands, f32 accumulation on the MXU.
        return jnp.dot(lhs.astype(jnp.bfloat16), at,
                       preferred_element_type=jnp.float32)

    def lin(w, x):
        # Small [Cout,Cin] @ [Cin,N] weight application, f32.
        return jnp.dot(w, x, preferred_element_type=jnp.float32)

    # g1 + bn1 + relu: Cin(8) < Cout(16) -> propagate first, then apply W.
    h = jnp.maximum(lin(w1, prop(z)) + t1, 0.0)                 # [16, N]

    # stage1 (GCNRes 16 -> 32 -> 16, residual)
    r = h
    a = jnp.maximum(lin(w2a, prop(h)) + t2a, 0.0)               # propagate-first
    h = jnp.maximum(prop(lin(w2b, a)) + t2b + r, 0.0)           # lin-first

    # stage2 (GCNRes 16 -> 32 -> 16, residual)
    r = h
    a = jnp.maximum(lin(w3a, prop(h)) + t3a, 0.0)
    h = jnp.maximum(prop(lin(w3b, a)) + t3b + r, 0.0)

    # header 16 -> 1 (+ bias): project to [1,N] on the VPU (sublane reduce),
    # then propagate a single row through the MXU.
    proj = jnp.sum(h * wh, axis=0, keepdims=True)               # [1, N]
    pre = prop(proj) + bh
    o_ref[...] = jax.nn.sigmoid(pre).astype(o_ref.dtype)


def _vmem_capacity_bytes():
    cap = 64 << 20                      # conservative fallback (v7x per-TC VMEM)
    try:
        info = pltpu.get_tpu_info()
        cap = int(getattr(info, "vmem_capacity_bytes", cap) or cap)
    except Exception:
        pass
    return cap


def gcnd2_forward(x, ahat, packed):
    """x: [N, IN_CH] f32, ahat: [N, N] f32 symmetric normalized adjacency.
    packed: [P_ROWS, P_COLS] f32 packed parameters.  Returns [N, 1] f32."""
    n, c = x.shape
    assert c == IN_CH
    n_pad = max(LANE, ((n + LANE - 1) // LANE) * LANE)

    # Feature-major, lane-padded, bf16 inputs.  A_hat is symmetric -> no transpose.
    zt = jnp.zeros((IN_CH, n_pad), jnp.bfloat16).at[:, :n].set(
        x.T.astype(jnp.bfloat16))
    at = jnp.zeros((n_pad, n_pad), jnp.bfloat16).at[:n, :n].set(
        ahat.astype(jnp.bfloat16))

    # Per-generation VMEM budget (~80% of physical capacity).
    vmem_ceiling = (_vmem_capacity_bytes() * 4) // 5
    act_bytes = 160 * n_pad * 4            # live [C,N] f32 activation slabs
    out_bytes = 8 * n_pad * 4              # output tile (sublane-padded)
    vmem_need = (zt.nbytes + at.nbytes + packed.nbytes
                 + out_bytes + act_bytes + (2 << 20))
    if vmem_need > vmem_ceiling:
        # TODO(synk): large-N path — keep A_hat in HBM (memory_space=pl.ANY) and
        # stream column tiles per propagation with pltpu.emit_pipeline (dual-core
        # split on v7x) instead of requiring full VMEM residency.
        raise ValueError(
            f"graph too large for the VMEM-resident path: need ~{vmem_need} B, "
            f"budget {vmem_ceiling} B")
    vmem_limit = int(min(vmem_ceiling, max(vmem_need, 32 << 20)))

    vmem = pltpu.MemorySpace.VMEM
    out = pl.pallas_call(
        _gcnd2_kernel,
        out_shape=jax.ShapeDtypeStruct((OUT_CH, n_pad), jnp.float32),
        in_specs=[pl.BlockSpec(memory_space=vmem),   # zt
                  pl.BlockSpec(memory_space=vmem),   # at
                  pl.BlockSpec(memory_space=vmem)],  # packed params
        out_specs=pl.BlockSpec(memory_space=vmem),
        compiler_params=pltpu.CompilerParams(vmem_limit_bytes=vmem_limit),
    )(zt, at, packed)

    return out[:, :n].T                     # [N, 1] f32


def build_ahat(es, n):
    """Dense D^-1/2 (A + I) D^-1/2 from a directed edge list (symmetrized)."""
    src, dst = es[0], es[1]
    a = jnp.zeros((n, n), jnp.float32)
    a = a.at[dst, src].set(1.0)
    a = a.at[src, dst].set(1.0)                                  # undirected
    a = jnp.maximum(a, jnp.eye(n, dtype=jnp.float32))            # self loops
    deg = jnp.sum(a, axis=1)
    dinv = 1.0 / jnp.sqrt(deg)                                   # deg >= 1
    return dinv[:, None] * a * dinv[None, :]                     # symmetric


def make_raw_params(key):
    ks = jax.random.split(key, 12)

    def lin(k, cin, cout):
        return jax.random.normal(k, (cin, cout), jnp.float32) * (1.0 / cin ** 0.5)

    def bn(k, c):  # synthetic inference-mode BatchNorm params
        kg, kb, km, kv = jax.random.split(k, 4)
        gamma = 1.0 + 0.1 * jax.random.normal(kg, (c,), jnp.float32)
        beta = 0.1 * jax.random.normal(kb, (c,), jnp.float32)
        mean = 0.1 * jax.random.normal(km, (c,), jnp.float32)
        var = 1.0 + 0.2 * jax.random.uniform(kv, (c,), jnp.float32)
        return (gamma, beta, mean, var)

    w1 = lin(ks[0], IN_CH, HID);    bn1 = bn(ks[1], HID)
    w2a = lin(ks[2], HID, INNER);   bn2a = bn(ks[3], INNER)
    w2b = lin(ks[4], INNER, HID);   bn2b = bn(ks[5], HID)
    w3a = lin(ks[6], HID, INNER);   bn3a = bn(ks[7], INNER)
    w3b = lin(ks[8], INNER, HID);   bn3b = bn(ks[9], HID)
    wh = lin(ks[10], HID, OUT_CH)
    bh = 0.1 * jax.random.normal(ks[11], (), jnp.float32)
    return (w1, bn1, w2a, bn2a, w2b, bn2b, w3a, bn3a, w3b, bn3b, wh, bh)


def fold_and_pack_params(raw, eps=1e-5):
    """Fold BN scale into the weights and pack everything into ONE f32 array."""
    (w1, bn1, w2a, bn2a, w2b, bn2b, w3a, bn3a, w3b, bn3b, wh, bh) = raw

    def fold(w, p):
        gamma, beta, mean, var = p
        scale = gamma / jnp.sqrt(var + eps)          # [Cout]
        shift = beta - mean * scale
        return (w * scale[None, :]).T, shift[:, None]  # [Cout,Cin], [Cout,1]

    packed = jnp.zeros((P_ROWS, P_COLS), jnp.float32)

    def put(pk, spec, wf, tf):
        r0, cout, cin = spec
        pk = pk.at[r0:r0 + cout, 0:cin].set(wf)
        pk = pk.at[r0:r0 + cout, cin:cin + 1].set(tf)
        return pk

    packed = put(packed, _L1, *fold(w1, bn1))
    packed = put(packed, _L2A, *fold(w2a, bn2a))
    packed = put(packed, _L2B, *fold(w2b, bn2b))
    packed = put(packed, _L3A, *fold(w3a, bn3a))
    packed = put(packed, _L3B, *fold(w3b, bn3b))
    packed = packed.at[0:HID, _WH_COL:_WH_COL + 1].set(wh)        # header weight
    packed = packed.at[0:1, _BH_COL:_BH_COL + 1].set(
        jnp.reshape(bh, (1, 1)).astype(jnp.float32))              # header bias
    return packed


def reference_forward(x, ahat, raw, eps=1e-5):
    (w1, bn1, w2a, bn2a, w2b, bn2b, w3a, bn3a, w3b, bn3b, wh, bh) = raw
    mm = functools.partial(jnp.matmul, precision=lax.Precision.HIGHEST)

    def gcn(h, w):
        return mm(ahat, mm(h, w))

    def bn(h, p):
        gamma, beta, mean, var = p
        scale = gamma / jnp.sqrt(var + eps)
        return (h - mean) * scale + beta

    h = jax.nn.relu(bn(gcn(x, w1), bn1))
    r = h
    a = jax.nn.relu(bn(gcn(h, w2a), bn2a))
    h = jax.nn.relu(bn(gcn(a, w2b), bn2b) + r)
    r = h
    a = jax.nn.relu(bn(gcn(h, w3a), bn3a))
    h = jax.nn.relu(bn(gcn(a, w3b), bn3b) + r)
    return jax.nn.sigmoid(gcn(h, wh) + bh)


if __name__ == "__main__":
    key = jax.random.PRNGKey(0)
    kx, ke, kp = jax.random.split(key, 3)

    n_nodes = 256   # multiple of 128 -> lane-dense, no padding waste
    n_edges = 1024
    x = jax.random.normal(kx, (n_nodes, IN_CH), jnp.float32)
    es = jax.random.randint(ke, (2, n_edges), 0, n_nodes, jnp.int32)

    ahat = build_ahat(es, n_nodes)
    raw = make_raw_params(kp)
    packed = fold_and_pack_params(raw)

    out = gcnd2_forward(x, ahat, packed)
    out = jax.block_until_ready(out)
    assert out.shape == (n_nodes, OUT_CH)

    ref = reference_forward(x, ahat, raw)
    err = float(jnp.max(jnp.abs(out - ref)))
    # bf16 adjacency/propagation operands (f32 accumulation) add ~2^-9 relative
    # error per propagation; 3e-2 bounds the 7 propagations with wide margin.
    assert err < 3e-2, f"max abs err {err}"
    print("KERNEL_OK")
</pallas_src>

<mosaic_0001>
module attributes {stable_mosaic.version = 11 : i64} {
  func.func @_gcnd2_kernel(%arg0: memref<8x256xbf16, #tpu.memory_space<vmem>>, %arg1: memref<256x256xbf16, #tpu.memory_space<vmem>>, %arg2: memref<112x128xf32, #tpu.memory_space<vmem>>, %arg3: memref<1x256xf32, #tpu.memory_space<vmem>>) attributes {dimension_semantics = [], scalar_prefetch = 0 : i64, scratch_operands = 0 : i64, tpu.core_type = #tpu.core_type<tc>} {
    %c0 = arith.constant 0 : index
    %c0_0 = arith.constant 0 : index
    %0 = vector.load %arg1[%c0, %c0_0] : memref<256x256xbf16, #tpu.memory_space<vmem>>, vector<256x256xbf16>
    %c0_1 = arith.constant 0 : index
    %c0_2 = arith.constant 0 : index
    %1 = vector.load %arg0[%c0_1, %c0_2] : memref<8x256xbf16, #tpu.memory_space<vmem>>, vector<8x256xbf16>
    %c0_3 = arith.constant 0 : index
    %c0_4 = arith.constant 0 : index
    %2 = vector.load %arg2[%c0_3, %c0_4] : memref<112x128xf32, #tpu.memory_space<vmem>>, vector<16x8xf32>
    %c0_5 = arith.constant 0 : index
    %c8 = arith.constant 8 : index
    %3 = vector.load %arg2[%c0_5, %c8] : memref<112x128xf32, #tpu.memory_space<vmem>>, vector<16x1xf32>
    %c16 = arith.constant 16 : index
    %c0_6 = arith.constant 0 : index
    %4 = vector.load %arg2[%c16, %c0_6] : memref<112x128xf32, #tpu.memory_space<vmem>>, vector<32x16xf32>
    %c16_7 = arith.constant 16 : index
    %c16_8 = arith.constant 16 : index
    %5 = vector.load %arg2[%c16_7, %c16_8] : memref<112x128xf32, #tpu.memory_space<vmem>>, vector<32x1xf32>
    %c48 = arith.constant 48 : index
    %c0_9 = arith.constant 0 : index
    %6 = vector.load %arg2[%c48, %c0_9] : memref<112x128xf32, #tpu.memory_space<vmem>>, vector<16x32xf32>
    %c48_10 = arith.constant 48 : index
    %c32 = arith.constant 32 : index
    %7 = vector.load %arg2[%c48_10, %c32] : memref<112x128xf32, #tpu.memory_space<vmem>>, vector<16x1xf32>
    %c64 = arith.constant 64 : index
    %c0_11 = arith.constant 0 : index
    %8 = vector.load %arg2[%c64, %c0_11] : memref<112x128xf32, #tpu.memory_space<vmem>>, vector<32x16xf32>
    %c64_12 = arith.constant 64 : index
    %c16_13 = arith.constant 16 : index
    %9 = vector.load %arg2[%c64_12, %c16_13] : memref<112x128xf32, #tpu.memory_space<vmem>>, vector<32x1xf32>
    %c96 = arith.constant 96 : index
    %c0_14 = arith.constant 0 : index
    %10 = vector.load %arg2[%c96, %c0_14] : memref<112x128xf32, #tpu.memory_space<vmem>>, vector<16x32xf32>
    %c96_15 = arith.constant 96 : index
    %c32_16 = arith.constant 32 : index
    %11 = vector.load %arg2[%c96_15, %c32_16] : memref<112x128xf32, #tpu.memory_space<vmem>>, vector<16x1xf32>
    %c0_17 = arith.constant 0 : index
    %c40 = arith.constant 40 : index
    %12 = vector.load %arg2[%c0_17, %c40] : memref<112x128xf32, #tpu.memory_space<vmem>>, vector<16x1xf32>
    %c0_18 = arith.constant 0 : index
    %c41 = arith.constant 41 : index
    %13 = vector.load %arg2[%c0_18, %c41] : memref<112x128xf32, #tpu.memory_space<vmem>>, vector<1x1xf32>
    %cst = arith.constant dense<0.000000e+00> : vector<8x256xf32>
    %14 = tpu.matmul %1, %0, %cst {dimension_numbers = #tpu.dot_dimension_numbers<[1], [0], [0], [1], [0, 0, 1, 1], [], []>} : vector<8x256xbf16>, vector<256x256xbf16>, vector<8x256xf32> -> vector<8x256xf32>
    %cst_19 = arith.constant dense<0.000000e+00> : vector<16x256xf32>
    %15 = tpu.matmul %2, %14, %cst_19 {dimension_numbers = #tpu.dot_dimension_numbers<[1], [0], [0], [1], [0, 0, 1, 1], [], []>} : vector<16x8xf32>, vector<8x256xf32>, vector<16x256xf32> -> vector<16x256xf32>
    %16 = vector.broadcast %3 : vector<16x1xf32> to vector<16x256xf32>
    %17 = arith.addf %15, %16 : vector<16x256xf32>
    %cst_20 = arith.constant 0.000000e+00 : f32
    %18 = vector.broadcast %cst_20 : f32 to vector<16x256xf32>
    %19 = arith.maximumf %17, %18 : vector<16x256xf32>
    %20 = arith.truncf %19 : vector<16x256xf32> to vector<16x256xbf16>
    %cst_21 = arith.constant dense<0.000000e+00> : vector<16x256xf32>
    %21 = tpu.matmul %20, %0, %cst_21 {dimension_numbers = #tpu.dot_dimension_numbers<[1], [0], [0], [1], [0, 0, 1, 1], [], []>} : vector<16x256xbf16>, vector<256x256xbf16>, vector<16x256xf32> -> vector<16x256xf32>
    %cst_22 = arith.constant dense<0.000000e+00> : vector<32x256xf32>
    %22 = tpu.matmul %4, %21, %cst_22 {dimension_numbers = #tpu.dot_dimension_numbers<[1], [0], [0], [1], [0, 0, 1, 1], [], []>} : vector<32x16xf32>, vector<16x256xf32>, vector<32x256xf32> -> vector<32x256xf32>
    %23 = vector.broadcast %5 : vector<32x1xf32> to vector<32x256xf32>
    %24 = arith.addf %22, %23 : vector<32x256xf32>
    %cst_23 = arith.constant 0.000000e+00 : f32
    %25 = vector.broadcast %cst_23 : f32 to vector<32x256xf32>
    %26 = arith.maximumf %24, %25 : vector<32x256xf32>
    %cst_24 = arith.constant dense<0.000000e+00> : vector<16x256xf32>
    %27 = tpu.matmul %6, %26, %cst_24 {dimension_numbers = #tpu.dot_dimension_numbers<[1], [0], [0], [1], [0, 0, 1, 1], [], []>} : vector<16x32xf32>, vector<32x256xf32>, vector<16x256xf32> -> vector<16x256xf32>
    %28 = arith.truncf %27 : vector<16x256xf32> to vector<16x256xbf16>
    %cst_25 = arith.constant dense<0.000000e+00> : vector<16x256xf32>
    %29 = tpu.matmul %28, %0, %cst_25 {dimension_numbers = #tpu.dot_dimension_numbers<[1], [0], [0], [1], [0, 0, 1, 1], [], []>} : vector<16x256xbf16>, vector<256x256xbf16>, vector<16x256xf32> -> vector<16x256xf32>
    %30 = vector.broadcast %7 : vector<16x1xf32> to vector<16x256xf32>
    %31 = arith.addf %29, %30 : vector<16x256xf32>
    %32 = arith.addf %31, %19 : vector<16x256xf32>
    %cst_26 = arith.constant 0.000000e+00 : f32
    %33 = vector.broadcast %cst_26 : f32 to vector<16x256xf32>
    %34 = arith.maximumf %32, %33 : vector<16x256xf32>
    %35 = arith.truncf %34 : vector<16x256xf32> to vector<16x256xbf16>
    %cst_27 = arith.constant dense<0.000000e+00> : vector<16x256xf32>
    %36 = tpu.matmul %35, %0, %cst_27 {dimension_numbers = #tpu.dot_dimension_numbers<[1], [0], [0], [1], [0, 0, 1, 1], [], []>} : vector<16x256xbf16>, vector<256x256xbf16>, vector<16x256xf32> -> vector<16x256xf32>
    %cst_28 = arith.constant dense<0.000000e+00> : vector<32x256xf32>
    %37 = tpu.matmul %8, %36, %cst_28 {dimension_numbers = #tpu.dot_dimension_numbers<[1], [0], [0], [1], [0, 0, 1, 1], [], []>} : vector<32x16xf32>, vector<16x256xf32>, vector<32x256xf32> -> vector<32x256xf32>
    %38 = vector.broadcast %9 : vector<32x1xf32> to vector<32x256xf32>
    %39 = arith.addf %37, %38 : vector<32x256xf32>
    %cst_29 = arith.constant 0.000000e+00 : f32
    %40 = vector.broadcast %cst_29 : f32 to vector<32x256xf32>
    %41 = arith.maximumf %39, %40 : vector<32x256xf32>
    %cst_30 = arith.constant dense<0.000000e+00> : vector<16x256xf32>
    %42 = tpu.matmul %10, %41, %cst_30 {dimension_numbers = #tpu.dot_dimension_numbers<[1], [0], [0], [1], [0, 0, 1, 1], [], []>} : vector<16x32xf32>, vector<32x256xf32>, vector<16x256xf32> -> vector<16x256xf32>
    %43 = arith.truncf %42 : vector<16x256xf32> to vector<16x256xbf16>
    %cst_31 = arith.constant dense<0.000000e+00> : vector<16x256xf32>
    %44 = tpu.matmul %43, %0, %cst_31 {dimension_numbers = #tpu.dot_dimension_numbers<[1], [0], [0], [1], [0, 0, 1, 1], [], []>} : vector<16x256xbf16>, vector<256x256xbf16>, vector<16x256xf32> -> vector<16x256xf32>
    %45 = vector.broadcast %11 : vector<16x1xf32> to vector<16x256xf32>
    %46 = arith.addf %44, %45 : vector<16x256xf32>
    %47 = arith.addf %46, %34 : vector<16x256xf32>
    %cst_32 = arith.constant 0.000000e+00 : f32
    %48 = vector.broadcast %cst_32 : f32 to vector<16x256xf32>
    %49 = arith.maximumf %47, %48 : vector<16x256xf32>
    %50 = vector.broadcast %12 : vector<16x1xf32> to vector<16x256xf32>
    %51 = arith.mulf %49, %50 : vector<16x256xf32>
    %cst_33 = arith.constant dense<0.000000e+00> : vector<256xf32>
    %52 = vector.multi_reduction <add>, %51, %cst_33 [0] : vector<16x256xf32> to vector<256xf32>
    %53 = vector.shape_cast %52 : vector<256xf32> to vector<1x256xf32>
    %54 = arith.truncf %53 : vector<1x256xf32> to vector<1x256xbf16>
    %cst_34 = arith.constant dense<0.000000e+00> : vector<1x256xf32>
    %55 = tpu.matmul %54, %0, %cst_34 {dimension_numbers = #tpu.dot_dimension_numbers<[1], [0], [0], [1], [0, 0, 1, 1], [], []>} : vector<1x256xbf16>, vector<256x256xbf16>, vector<1x256xf32> -> vector<1x256xf32>
    %56 = vector.broadcast %13 : vector<1x1xf32> to vector<1x256xf32>
    %57 = arith.addf %55, %56 : vector<1x256xf32>
    %58 = arith.negf %57 : vector<1x256xf32>
    %59 = math.exp %58 : vector<1x256xf32>
    %cst_35 = arith.constant 1.000000e+00 : f32
    %60 = vector.broadcast %cst_35 : f32 to vector<1x256xf32>
    %61 = arith.addf %60, %59 : vector<1x256xf32>
    %62 = arith.divf %60, %61 : vector<1x256xf32>
    %c0_36 = arith.constant 0 : index
    %c0_37 = arith.constant 0 : index
    %63 = vector.load %arg3[%c0_36, %c0_37] : memref<1x256xf32, #tpu.memory_space<vmem>>, vector<1x256xf32>
    tpu.vector_store %arg3[%c0_36, %c0_37], %62 {strides = array<i32>} : memref<1x256xf32, #tpu.memory_space<vmem>>, vector<1x256xf32>,
    return
  }
}

</mosaic_0001>

<llo_original>
// kernel: tpu_custom_call.1
$region0: #{tpu_custom_call.1}
  #allocation0 [shape = 'u32[]', space=smem, size = 0x4, offset = 0x4, fixed_abs, tag = 'smem constant byte address 0x4 - core index']
  #allocation1 [shape = 'u32[144,128]{1,0:T(1,128)}', space=vmem, size = 0x12000, scoped, tag = 'internal scratch']
  %s0 = inlined_call_operand.hbm [shape: bf16[8,256], index: 0, kind: input, shape index: {}]
  %s1 = inlined_call_operand.hbm [shape: bf16[256,256], index: 1, kind: input, shape index: {}]
  %s2 = inlined_call_operand.hbm [shape: f32[112,128], index: 2, kind: input, shape index: {}]
  %s3 = inlined_call_operand.hbm [shape: f32[1,256], index: 3, kind: output, shape index: {}]
  %s4 = sld [smem:[#allocation0]]
  $region34: #{tpu_custom_call.1} parent=0
    _
  %s6 = ssub.s32 1, %s4
  %s7 = scalar_select 0, %s6, %s4
  $region1: #{tpu_custom_call.1} parent=0
    #allocation2 [shape = 'u8[4096]{0}', space=vmem, size = 0x1000, scoped, tag = 'input window, operand 0, single buffered']
    #allocation3 [shape = 's32[1]{0}', space=sflag, size = 0x4, scoped, tag = 'scoped memory for tpu_custom_call.1']
    #allocation4 [shape = 's32[1]{0}', space=sflag, size = 0x4, scoped, tag = 'scoped memory for tpu_custom_call.1']
    #allocation5 [shape = 'u8[131072]{0}', space=vmem, size = 0x20000, scoped, tag = 'input window, operand 1, single buffered']
    #allocation6 [shape = 's32[1]{0}', space=sflag, size = 0x4, scoped, tag = 'scoped memory for tpu_custom_call.1']
    #allocation7 [shape = 'u8[57344]{0}', space=vmem, size = 0xe000, scoped, tag = 'input window, operand 2, single buffered']
    #allocation8 [shape = 'u8[1024]{0}', space=vmem, size = 0x400, scoped, tag = 'output window, operand 0, single buffered']
    %8 = vsyncpa [#allocation3], 0
    %9 = vsyncpa [#allocation6], 0
    %10 = vsyncpa [#allocation4], 0
    // Predicated region
    $region2: #{tpu_custom_call.1} parent=1 // pred_check
      _
    $region3: #{tpu_custom_call.1} parent=1 // pred_check_branch
      %12 = sbr.rel (0) target = $region5
    $region4: #{tpu_custom_call.1} parent=1 // pred_region
      %s14 = ssub.s32 128, 128
      %15 = vsyncadd [#allocation3], %s14
      %s17 = sshll.u32 [#allocation2], 4
      %s18 = int_to_ptr.vmem [resolvable:$true] %s17
      %20 = dma.hbm_to_vmem [thread:$0]  %s0, 128, %s18, [#allocation3]
    $region5: #{tpu_custom_call.1} parent=1 // pred_fallthru
      _
    // Predicated region
    $region6: #{tpu_custom_call.1} parent=1 // pred_check
      _
    $region7: #{tpu_custom_call.1} parent=1 // pred_check_branch
      %22 = sbr.rel (0) target = $region9
    $region8: #{tpu_custom_call.1} parent=1 // pred_region
      %s24 = ssub.s32 4096, 4096
      %25 = vsyncadd [#allocation6], %s24
      %s26 = sshll.u32 [#allocation5], 4
      %s27 = int_to_ptr.vmem [resolvable:$true] %s26
      %32 = dma.hbm_to_vmem [thread:$0]  %s1, 4096, %s27, [#allocation6], 128, 128, 8
    $region9: #{tpu_custom_call.1} parent=1 // pred_fallthru
      _
    // Predicated region
    $region10: #{tpu_custom_call.1} parent=1 // pred_check
      _
    $region11: #{tpu_custom_call.1} parent=1 // pred_check_branch
      %34 = sbr.rel (0) target = $region13
    $region12: #{tpu_custom_call.1} parent=1 // pred_region
      %s36 = ssub.s32 1792, 1792
      %37 = vsyncadd [#allocation6], %s36
      %s38 = sshll.u32 [#allocation7], 4
      %s39 = int_to_ptr.vmem [resolvable:$true] %s38
      %44 = dma.hbm_to_vmem [thread:$0]  %s2, 1792, %s39, [#allocation6], 128, 128, 8
    $region13: #{tpu_custom_call.1} parent=1 // pred_fallthru
      _
    // Predicated region
    $region14: #{tpu_custom_call.1} parent=1 // pred_check
      _
    $region15: #{tpu_custom_call.1} parent=1 // pred_check_branch
      %46 = sbr.rel (0) target = $region17
    $region16: #{tpu_custom_call.1} parent=1 // pred_region
      %47 = dma.done [#allocation3], 128
    $region17: #{tpu_custom_call.1} parent=1 // pred_fallthru
      _
    // Predicated region
    $region18: #{tpu_custom_call.1} parent=1 // pred_check
      _
    $region19: #{tpu_custom_call.1} parent=1 // pred_check_branch
      %49 = sbr.rel (0) target = $region21
    $region20: #{tpu_custom_call.1} parent=1 // pred_region
      %50 = dma.done [#allocation6], 4096
    $region21: #{tpu_custom_call.1} parent=1 // pred_fallthru
      _
    // Predicated region
    $region22: #{tpu_custom_call.1} parent=1 // pred_check
      _
    $region23: #{tpu_custom_call.1} parent=1 // pred_check_branch
      %52 = sbr.rel (0) target = $region25
    $region24: #{tpu_custom_call.1} parent=1 // pred_region
      %53 = dma.done [#allocation6], 1792
    $region25: #{tpu_custom_call.1} parent=1 // pred_fallthru
      _
    %v54 = vld [vmem:[#allocation5] sm:$0xff]
    %v55 = vld [vmem:[#allocation5 + $0x8] sm:$0xff]
    %v56 = vld [vmem:[#allocation5 + $0x10] sm:$0xff]
    %v57 = vld [vmem:[#allocation5 + $0x18] sm:$0xff]
    %v58 = vld [vmem:[#allocation5 + $0x20] sm:$0xff]
    %v59 = vld [vmem:[#allocation5 + $0x28] sm:$0xff]
    %v60 = vld [vmem:[#allocation5 + $0x30] sm:$0xff]
    %v61 = vld [vmem:[#allocation5 + $0x38] sm:$0xff]
    %v62 = vld [vmem:[#allocation5 + $0x40] sm:$0xff]
    %v63 = vld [vmem:[#allocation5 + $0x48] sm:$0xff]
    %v64 = vld [vmem:[#allocation5 + $0x50] sm:$0xff]
    %v65 = vld [vmem:[#allocation5 + $0x58] sm:$0xff]
    %v66 = vld [vmem:[#allocation5 + $0x60] sm:$0xff]
    %v67 = vld [vmem:[#allocation5 + $0x68] sm:$0xff]
    %v68 = vld [vmem:[#allocation5 + $0x70] sm:$0xff]
    %v69 = vld [vmem:[#allocation5 + $0x78] sm:$0xff]
    %v70 = vld [vmem:[#allocation5 + $0x80] sm:$0xff]
    %v71 = vld [vmem:[#allocation5 + $0x88] sm:$0xff]
    %v72 = vld [vmem:[#allocation5 + $0x90] sm:$0xff]
    %v73 = vld [vmem:[#allocation5 + $0x98] sm:$0xff]
    %v74 = vld [vmem:[#allocation5 + $0xa0] sm:$0xff]
    %v75 = vld [vmem:[#allocation5 + $0xa8] sm:$0xff]
    %v76 = vld [vmem:[#allocation5 + $0xb0] sm:$0xff]
    %v77 = vld [vmem:[#allocation5 + $0xb8] sm:$0xff]
    %v78 = vld [vmem:[#allocation5 + $0xc0] sm:$0xff]
    %v79 = vld [vmem:[#allocation5 + $0xc8] sm:$0xff]
    %v80 = vld [vmem:[#allocation5 + $0xd0] sm:$0xff]
    %v81 = vld [vmem:[#allocation5 + $0xd8] sm:$0xff]
    %v82 = vld [vmem:[#allocation5 + $0xe0] sm:$0xff]
    %v83 = vld [vmem:[#allocation5 + $0xe8] sm:$0xff]
    %v84 = vld [vmem:[#allocation5 + $0xf0] sm:$0xff]
    %v85 = vld [vmem:[#allocation5 + $0xf8] sm:$0xff]
    %v86 = vld [vmem:[#allocation2] sm:$0xff]
    %v87 = vld [vmem:[#allocation7] sm:$0xff]
    %v88 = vld [vmem:[#allocation7 + $0x8] sm:$0xff]
    %v89 = vld [vmem:[#allocation7 + $0x10] sm:$0xff]
    %v90 = vld [vmem:[#allocation7 + $0x18] sm:$0xff]
    %v91 = vld [vmem:[#allocation7 + $0x20] sm:$0xff]
    %v92 = vld [vmem:[#allocation7 + $0x28] sm:$0xff]
    %v93 = vld [vmem:[#allocation7 + $0x30] sm:$0xff]
    %v94 = vld [vmem:[#allocation7 + $0x38] sm:$0xff]
    %v95 = vld [vmem:[#allocation7 + $0x40] sm:$0xff]
    %v96 = vld [vmem:[#allocation7 + $0x48] sm:$0xff]
    %v97 = vld [vmem:[#allocation7 + $0x50] sm:$0xff]
    %v98 = vld [vmem:[#allocation7 + $0x58] sm:$0xff]
    %v99 = vld [vmem:[#allocation7 + $0x60] sm:$0xff]
    %v100 = vld [vmem:[#allocation7 + $0x68] sm:$0xff]
    %v101 = vld [vmem:[#allocation7] sm:$0x1]
    %v103 = vunpack.c.l.b16 %v86
    %v104 = vunpack.c.h.b16 %v86
    %v105 = vpack.c.b16 %v103, %v103
    %v106 = vpack.c.b16 %v104, %v104
    %v141 = vunpack.c.l.b16 %v54
    %v142 = vunpack.c.h.b16 %v54
    %v143 = vunpack.c.l.b16 %v55
    %v144 = vunpack.c.h.b16 %v55
    %v145 = vunpack.c.l.b16 %v56
    %v146 = vunpack.c.h.b16 %v56
    %v147 = vunpack.c.l.b16 %v57
    %v148 = vunpack.c.h.b16 %v57
    %v149 = vunpack.c.l.b16 %v58
    %v150 = vunpack.c.h.b16 %v58
    %v151 = vunpack.c.l.b16 %v59
    %v152 = vunpack.c.h.b16 %v59
    %v153 = vunpack.c.l.b16 %v60
    %v154 = vunpack.c.h.b16 %v60
    %v155 = vunpack.c.l.b16 %v61
    %v156 = vunpack.c.h.b16 %v61
    %v157 = vunpack.c.l.b16 %v62
    %v158 = vunpack.c.h.b16 %v62
    %v159 = vunpack.c.l.b16 %v63
    %v160 = vunpack.c.h.b16 %v63
    %v161 = vunpack.c.l.b16 %v64
    %v162 = vunpack.c.h.b16 %v64
    %v163 = vunpack.c.l.b16 %v65
    %v164 = vunpack.c.h.b16 %v65
    %v165 = vunpack.c.l.b16 %v66
    %v166 = vunpack.c.h.b16 %v66
    %v167 = vunpack.c.l.b16 %v67
    %v168 = vunpack.c.h.b16 %v67
    %v169 = vunpack.c.l.b16 %v68
    %v170 = vunpack.c.h.b16 %v68
    %v171 = vunpack.c.l.b16 %v69
    %v172 = vunpack.c.h.b16 %v69
    %v173 = vunpack.c.l.b16 %v70
    %v174 = vunpack.c.h.b16 %v70
    %v175 = vunpack.c.l.b16 %v71
    %v176 = vunpack.c.h.b16 %v71
    %v177 = vunpack.c.l.b16 %v72
    %v178 = vunpack.c.h.b16 %v72
    %v179 = vunpack.c.l.b16 %v73
    %v180 = vunpack.c.h.b16 %v73
    %v181 = vunpack.c.l.b16 %v74
    %v182 = vunpack.c.h.b16 %v74
    %v183 = vunpack.c.l.b16 %v75
    %v184 = vunpack.c.h.b16 %v75
    %v185 = vunpack.c.l.b16 %v76
    %v186 = vunpack.c.h.b16 %v76
    %v187 = vunpack.c.l.b16 %v77
    %v188 = vunpack.c.h.b16 %v77
    %v189 = vunpack.c.l.b16 %v78
    %v190 = vunpack.c.h.b16 %v78
    %v191 = vunpack.c.l.b16 %v79
    %v192 = vunpack.c.h.b16 %v79
    %v193 = vunpack.c.l.b16 %v80
    %v194 = vunpack.c.h.b16 %v80
    %v195 = vunpack.c.l.b16 %v81
    %v196 = vunpack.c.h.b16 %v81
    %v197 = vunpack.c.l.b16 %v82
    %v198 = vunpack.c.h.b16 %v82
    %v199 = vunpack.c.l.b16 %v83
    %v200 = vunpack.c.h.b16 %v83
    %v201 = vunpack.c.l.b16 %v84
    %v202 = vunpack.c.h.b16 %v84
    %v203 = vunpack.c.l.b16 %v85
    %v204 = vunpack.c.h.b16 %v85
    %v205 = vpack.c.b16 %v143, %v141
    %v206 = vpack.c.b16 %v144, %v142
    %v207 = vpack.c.b16 %v147, %v145
    %v208 = vpack.c.b16 %v148, %v146
    %v209 = vpack.c.b16 %v151, %v149
    %v210 = vpack.c.b16 %v152, %v150
    %v211 = vpack.c.b16 %v155, %v153
    %v212 = vpack.c.b16 %v156, %v154
    %v213 = vpack.c.b16 %v159, %v157
    %v214 = vpack.c.b16 %v160, %v158
    %v215 = vpack.c.b16 %v163, %v161
    %v216 = vpack.c.b16 %v164, %v162
    %v217 = vpack.c.b16 %v167, %v165
    %v218 = vpack.c.b16 %v168, %v166
    %v219 = vpack.c.b16 %v171, %v169
    %v220 = vpack.c.b16 %v172, %v170
    %v221 = vpack.c.b16 %v175, %v173
    %v222 = vpack.c.b16 %v176, %v174
    %v223 = vpack.c.b16 %v179, %v177
    %v224 = vpack.c.b16 %v180, %v178
    %v225 = vpack.c.b16 %v183, %v181
    %v226 = vpack.c.b16 %v184, %v182
    %v227 = vpack.c.b16 %v187, %v185
    %v228 = vpack.c.b16 %v188, %v186
    %v229 = vpack.c.b16 %v191, %v189
    %v230 = vpack.c.b16 %v192, %v190
    %v231 = vpack.c.b16 %v195, %v193
    %v232 = vpack.c.b16 %v196, %v194
    %v233 = vpack.c.b16 %v199, %v197
    %v234 = vpack.c.b16 %v200, %v198
    %v235 = vpack.c.b16 %v203, %v201
    %v236 = vpack.c.b16 %v204, %v202
    %269 = vmatprep.subr.bf16.mxu0 %v206
    %270 = vmatpush1.bf16.msra.mxu0 %v205
    %271 = vmatprep.subr.bf16.mxu0 %v208
    %272 = vmatpush1.bf16.msra.mxu0 %v207
    %273 = vmatprep.subr.bf16.mxu0 %v210
    %274 = vmatpush1.bf16.msra.mxu0 %v209
    %275 = vmatprep.subr.bf16.mxu0 %v212
    %276 = vmatpush1.bf16.msra.mxu0 %v211
    %277 = vmatprep.subr.bf16.mxu0 %v214
    %278 = vmatpush1.bf16.msra.mxu0 %v213
    %279 = vmatprep.subr.bf16.mxu0 %v216
    %280 = vmatpush1.bf16.msra.mxu0 %v215
    %281 = vmatprep.subr.bf16.mxu0 %v218
    %282 = vmatpush1.bf16.msra.mxu0 %v217
    %283 = vmatprep.subr.bf16.mxu0 %v220
    %284 = vmatpush1.bf16.msra.mxu0 %v219
    %285 = vmatprep.subr.bf16.mxu0 %v222
    %286 = vmatpush1.bf16.msra.mxu0 %v221
    %287 = vmatprep.subr.bf16.mxu0 %v224
    %288 = vmatpush1.bf16.msra.mxu0 %v223
    %289 = vmatprep.subr.bf16.mxu0 %v226
    %290 = vmatpush1.bf16.msra.mxu0 %v225
    %291 = vmatprep.subr.bf16.mxu0 %v228
    %292 = vmatpush1.bf16.msra.mxu0 %v227
    %293 = vmatprep.subr.bf16.mxu0 %v230
    %294 = vmatpush1.bf16.msra.mxu0 %v229
    %295 = vmatprep.subr.bf16.mxu0 %v232
    %296 = vmatpush1.bf16.msra.mxu0 %v231
    %297 = vmatprep.subr.bf16.mxu0 %v234
    %298 = vmatpush1.bf16.msra.mxu0 %v233
    %299 = vmatprep.subr.bf16.mxu0 %v236
    %300 = vmatpush1.bf16.msra.mxu0 %v235
    %301 = vmatprep.mubr.bf16.mxu0 %v106
    %302 = vmatmul.mubr.bf16.gmra.mrb[0].mxu0 %v105
    %v303 = vpop.f32.mrb[0].mxu0
    %v304 = vadd.f32 0.0, %v303
    %v305 = vpop.f32.mrb[0].mxu0
    %v306 = vadd.f32 0.0, %v305
    %v307 = vpop.f32.mrb[0].mxu0
    %v308 = vpop.f32.mrb[0].mxu0
    %309 = vdwg.mxu0
    %311 = vset.pattern.permute.xlu0 8
    %312 = vperm.xlu0 %311, %v87
    %v313 = vpop.permute.xlu0 %312
    %316 = vset.pattern.permute.xlu0 8
    %317 = vperm.xlu0 %316, %v88
    %v318 = vpop.permute.xlu0 %317
    %vm320 = vcmask 64512
    %v321 = vsel %vm320, %v87, 0
    %v323 = vsel %vm320, %v88, 0
    %325 = vmatprep.subr.mxu0 %v306
    %326 = vmatpush1.msra.mxu0 %v304
    %327 = vmatprep.subr.mxu0 0.0
    %328 = vmatpush1.msra.mxu0 0.0
    %329 = vmatprep.subr.mxu0 0.0
    %330 = vmatpush1.msra.mxu0 0.0
    %331 = vmatprep.subr.mxu0 0.0
    %332 = vmatpush1.msra.mxu0 0.0
    %333 = vmatprep.subr.mxu0 0.0
    %334 = vmatpush1.msra.mxu0 0.0
    %335 = vmatprep.subr.mxu0 0.0
    %336 = vmatpush1.msra.mxu0 0.0
    %337 = vmatprep.subr.mxu0 0.0
    %338 = vmatpush1.msra.mxu0 0.0
    %339 = vmatprep.subr.mxu0 0.0
    %340 = vmatpush1.msra.mxu0 0.0
    %341 = vmatprep.subr.mxu0 0.0
    %342 = vmatpush1.msra.mxu0 0.0
    %343 = vmatprep.subr.mxu0 0.0
    %344 = vmatpush1.msra.mxu0 0.0
    %345 = vmatprep.subr.mxu0 0.0
    %346 = vmatpush1.msra.mxu0 0.0
    %347 = vmatprep.subr.mxu0 0.0
    %348 = vmatpush1.msra.mxu0 0.0
    %349 = vmatprep.subr.mxu0 0.0
    %350 = vmatpush1.msra.mxu0 0.0
    %351 = vmatprep.subr.mxu0 0.0
    %352 = vmatpush1.msra.mxu0 0.0
    %353 = vmatprep.subr.mxu0 0.0
    %354 = vmatpush1.msra.mxu0 0.0
    %355 = vmatprep.subr.mxu0 0.0
    %356 = vmatpush1.msra.mxu0 0.0
    %357 = vmatprep.subr.mxu0 0.0
    %358 = vmatpush1.msra.mxu0 0.0
    %359 = vmatprep.subr.mxu0 0.0
    %360 = vmatpush1.msra.mxu0 0.0
    %361 = vmatprep.subr.mxu0 0.0
    %362 = vmatpush1.msra.mxu0 0.0
    %363 = vmatprep.subr.mxu0 0.0
    %364 = vmatpush1.msra.mxu0 0.0
    %365 = vmatprep.subr.mxu0 0.0
    %366 = vmatpush1.msra.mxu0 0.0
    %367 = vmatprep.subr.mxu0 0.0
    %368 = vmatpush1.msra.mxu0 0.0
    %369 = vmatprep.subr.mxu0 0.0
    %370 = vmatpush1.msra.mxu0 0.0
    %371 = vmatprep.subr.mxu0 0.0
    %372 = vmatpush1.msra.mxu0 0.0
    %373 = vmatprep.subr.mxu0 0.0
    %374 = vmatpush1.msra.mxu0 0.0
    %375 = vmatprep.subr.mxu0 0.0
    %376 = vmatpush1.msra.mxu0 0.0
    %377 = vmatprep.subr.mxu0 0.0
    %378 = vmatpush1.msra.mxu0 0.0
    %379 = vmatprep.subr.mxu0 0.0
    %380 = vmatpush1.msra.mxu0 0.0
    %381 = vmatprep.subr.mxu0 0.0
    %382 = vmatpush1.msra.mxu0 0.0
    %383 = vmatprep.subr.mxu0 0.0
    %384 = vmatpush1.msra.mxu0 0.0
    %385 = vmatprep.subr.mxu0 0.0
    %386 = vmatpush1.msra.mxu0 0.0
    %387 = vmatprep.subr.mxu0 0.0
    %388 = vmatpush1.msra.mxu0 0.0
    %389 = vmatprep.mubr.f32.mxu0 0.0
    %390 = vmatmul.mubr.f32.gmra.mrb[0].mxu0 %v321
    %v391 = vpop.f32.mrb[0].mxu0
    %v392 = vadd.f32 %v313, %v391
    %v393 = vpop.f32.mrb[0].mxu0
    %v394 = vadd.f32 %v313, %v393
    %395 = vmatprep.mubr.f32.mxu0 0.0
    %396 = vmatmul.mubr.f32.gmra.mrb[0].mxu0 %v323
    %v397 = vpop.f32.mrb[0].mxu0
    %v398 = vadd.f32 %v318, %v397
    %v399 = vpop.f32.mrb[0].mxu0
    %v400 = vadd.f32 %v318, %v399
    %401 = vdwg.mxu0
    %v402 = vmax.f32 %v392, 0.0
    %v403 = vmax.f32 %v394, 0.0
    %v404 = vmax.f32 %v398, 0.0
    %v405 = vmax.f32 %v400, 0.0
    %v406 = vpack.c.bf16 %v404, %v402
    %v407 = vpack.c.bf16 %v405, %v403
    %408 = vmatprep.subr.bf16.mxu0 %v206
    %409 = vmatpush1.bf16.msra.mxu0 %v205
    %410 = vmatprep.subr.bf16.mxu0 %v208
    %411 = vmatpush1.bf16.msra.mxu0 %v207
    %412 = vmatprep.subr.bf16.mxu0 %v210
    %413 = vmatpush1.bf16.msra.mxu0 %v209
    %414 = vmatprep.subr.bf16.mxu0 %v212
    %415 = vmatpush1.bf16.msra.mxu0 %v211
    %416 = vmatprep.subr.bf16.mxu0 %v214
    %417 = vmatpush1.bf16.msra.mxu0 %v213
    %418 = vmatprep.subr.bf16.mxu0 %v216
    %419 = vmatpush1.bf16.msra.mxu0 %v215
    %420 = vmatprep.subr.bf16.mxu0 %v218
    %421 = vmatpush1.bf16.msra.mxu0 %v217
    %422 = vmatprep.subr.bf16.mxu0 %v220
    %423 = vmatpush1.bf16.msra.mxu0 %v219
    %424 = vmatprep.subr.bf16.mxu0 %v222
    %425 = vmatpush1.bf16.msra.mxu0 %v221
    %426 = vmatprep.subr.bf16.mxu0 %v224
    %427 = vmatpush1.bf16.msra.mxu0 %v223
    %428 = vmatprep.subr.bf16.mxu0 %v226
    %429 = vmatpush1.bf16.msra.mxu0 %v225
    %430 = vmatprep.subr.bf16.mxu0 %v228
    %431 = vmatpush1.bf16.msra.mxu0 %v227
    %432 = vmatprep.subr.bf16.mxu0 %v230
    %433 = vmatpush1.bf16.msra.mxu0 %v229
    %434 = vmatprep.subr.bf16.mxu0 %v232
    %435 = vmatpush1.bf16.msra.mxu0 %v231
    %436 = vmatprep.subr.bf16.mxu0 %v234
    %437 = vmatpush1.bf16.msra.mxu0 %v233
    %438 = vmatprep.subr.bf16.mxu0 %v236
    %439 = vmatpush1.bf16.msra.mxu0 %v235
    %440 = vmatprep.mubr.bf16.mxu0 %v407
    %441 = vmatmul.mubr.bf16.gmra.mrb[0].mxu0 %v406
    %v442 = vpop.f32.mrb[0].mxu0
    %v443 = vadd.f32 0.0, %v442
    %v444 = vpop.f32.mrb[0].mxu0
    %v445 = vadd.f32 0.0, %v444
    %v446 = vpop.f32.mrb[0].mxu0
    %v447 = vadd.f32 0.0, %v446
    %v448 = vpop.f32.mrb[0].mxu0
    %v449 = vadd.f32 0.0, %v448
    %450 = vdwg.mxu0
    %452 = vset.pattern.permute.xlu0 16
    %453 = vperm.xlu0 %452, %v89
    %v454 = vpop.permute.xlu0 %453
    %457 = vset.pattern.permute.xlu0 16
    %458 = vperm.xlu0 %457, %v90
    %v459 = vpop.permute.xlu0 %458
    %462 = vset.pattern.permute.xlu0 16
    %463 = vperm.xlu0 %462, %v91
    %v464 = vpop.permute.xlu0 %463
    %467 = vset.pattern.permute.xlu0 16
    %468 = vperm.xlu0 %467, %v92
    %v469 = vpop.permute.xlu0 %468
    %vm471 = vcmask 130048
    %v472 = vsel %vm471, %v89, 0
    %v474 = vsel %vm471, %v90, 0
    %v476 = vsel %vm471, %v91, 0
    %v478 = vsel %vm471, %v92, 0
    %480 = vmatprep.subr.mxu0 %v445
    %481 = vmatpush1.msra.mxu0 %v443
    %482 = vmatprep.subr.mxu0 %v449
    %483 = vmatpush1.msra.mxu0 %v447
    %484 = vmatprep.subr.mxu0 0.0
    %485 = vmatpush1.msra.mxu0 0.0
    %486 = vmatprep.subr.mxu0 0.0
    %487 = vmatpush1.msra.mxu0 0.0
    %488 = vmatprep.subr.mxu0 0.0
    %489 = vmatpush1.msra.mxu0 0.0
    %490 = vmatprep.subr.mxu0 0.0
    %491 = vmatpush1.msra.mxu0 0.0
    %492 = vmatprep.subr.mxu0 0.0
    %493 = vmatpush1.msra.mxu0 0.0
    %494 = vmatprep.subr.mxu0 0.0
    %495 = vmatpush1.msra.mxu0 0.0
    %496 = vmatprep.subr.mxu0 0.0
    %497 = vmatpush1.msra.mxu0 0.0
    %498 = vmatprep.subr.mxu0 0.0
    %499 = vmatpush1.msra.mxu0 0.0
    %500 = vmatprep.subr.mxu0 0.0
    %501 = vmatpush1.msra.mxu0 0.0
    %502 = vmatprep.subr.mxu0 0.0
    %503 = vmatpush1.msra.mxu0 0.0
    %504 = vmatprep.subr.mxu0 0.0
    %505 = vmatpush1.msra.mxu0 0.0
    %506 = vmatprep.subr.mxu0 0.0
    %507 = vmatpush1.msra.mxu0 0.0
    %508 = vmatprep.subr.mxu0 0.0
    %509 = vmatpush1.msra.mxu0 0.0
    %510 = vmatprep.subr.mxu0 0.0
    %511 = vmatpush1.msra.mxu0 0.0
    %512 = vmatprep.subr.mxu0 0.0
    %513 = vmatpush1.msra.mxu0 0.0
    %514 = vmatprep.subr.mxu0 0.0
    %515 = vmatpush1.msra.mxu0 0.0
    %516 = vmatprep.subr.mxu0 0.0
    %517 = vmatpush1.msra.mxu0 0.0
    %518 = vmatprep.subr.mxu0 0.0
    %519 = vmatpush1.msra.mxu0 0.0
    %520 = vmatprep.subr.mxu0 0.0
    %521 = vmatpush1.msra.mxu0 0.0
    %522 = vmatprep.subr.mxu0 0.0
    %523 = vmatpush1.msra.mxu0 0.0
    %524 = vmatprep.subr.mxu0 0.0
    %525 = vmatpush1.msra.mxu0 0.0
    %526 = vmatprep.subr.mxu0 0.0
    %527 = vmatpush1.msra.mxu0 0.0
    %528 = vmatprep.subr.mxu0 0.0
    %529 = vmatpush1.msra.mxu0 0.0
    %530 = vmatprep.subr.mxu0 0.0
    %531 = vmatpush1.msra.mxu0 0.0
    %532 = vmatprep.subr.mxu0 0.0
    %533 = vmatpush1.msra.mxu0 0.0
    %534 = vmatprep.subr.mxu0 0.0
    %535 = vmatpush1.msra.mxu0 0.0
    %536 = vmatprep.subr.mxu0 0.0
    %537 = vmatpush1.msra.mxu0 0.0
    %538 = vmatprep.subr.mxu0 0.0
    %539 = vmatpush1.msra.mxu0 0.0
    %540 = vmatprep.subr.mxu0 0.0
    %541 = vmatpush1.msra.mxu0 0.0
    %542 = vmatprep.subr.mxu0 0.0
    %543 = vmatpush1.msra.mxu0 0.0
    %544 = vmatprep.mubr.f32.mxu0 0.0
    %545 = vmatmul.mubr.f32.gmra.mrb[0].mxu0 %v472
    %v546 = vpop.f32.mrb[0].mxu0
    %v547 = vadd.f32 %v454, %v546
    %v548 = vpop.f32.mrb[0].mxu0
    %v549 = vadd.f32 %v454, %v548
    %550 = vmatprep.mubr.f32.mxu0 0.0
    %551 = vmatmul.mubr.f32.gmra.mrb[0].mxu0 %v474
    %v552 = vpop.f32.mrb[0].mxu0
    %v553 = vadd.f32 %v459, %v552
    %v554 = vpop.f32.mrb[0].mxu0
    %v555 = vadd.f32 %v459, %v554
    %556 = vmatprep.mubr.f32.mxu0 0.0
    %557 = vmatmul.mubr.f32.gmra.mrb[0].mxu0 %v476
    %v558 = vpop.f32.mrb[0].mxu0
    %v559 = vadd.f32 %v464, %v558
    %v560 = vpop.f32.mrb[0].mxu0
    %v561 = vadd.f32 %v464, %v560
    %562 = vmatprep.mubr.f32.mxu0 0.0
    %563 = vmatmul.mubr.f32.gmra.mrb[0].mxu0 %v478
    %v564 = vpop.f32.mrb[0].mxu0
    %v565 = vadd.f32 %v469, %v564
    %v566 = vpop.f32.mrb[0].mxu0
    %v567 = vadd.f32 %v469, %v566
    %568 = vdwg.mxu0
    %v569 = vmax.f32 %v547, 0.0
    %v570 = vmax.f32 %v549, 0.0
    %v571 = vmax.f32 %v553, 0.0
    %v572 = vmax.f32 %v555, 0.0
    %v573 = vmax.f32 %v559, 0.0
    %v574 = vmax.f32 %v561, 0.0
    %v575 = vmax.f32 %v565, 0.0
    %v576 = vmax.f32 %v567, 0.0
    %vm577 = vcmask 261120
    %v579 = vsel %vm577, %v93, 0
    %v582 = vsel %vm577, %v94, 0
    %584 = vmatprep.subr.mxu0 %v570
    %585 = vmatpush1.msra.mxu0 %v569
    %586 = vmatprep.subr.mxu0 %v572
    %587 = vmatpush1.msra.mxu0 %v571
    %588 = vmatprep.subr.mxu0 %v574
    %589 = vmatpush1.msra.mxu0 %v573
    %590 = vmatprep.subr.mxu0 %v576
    %591 = vmatpush1.msra.mxu0 %v575
    %592 = vmatprep.subr.mxu0 0.0
    %593 = vmatpush1.msra.mxu0 0.0
    %594 = vmatprep.subr.mxu0 0.0
    %595 = vmatpush1.msra.mxu0 0.0
    %596 = vmatprep.subr.mxu0 0.0
    %597 = vmatpush1.msra.mxu0 0.0
    %598 = vmatprep.subr.mxu0 0.0
    %599 = vmatpush1.msra.mxu0 0.0
    %600 = vmatprep.subr.mxu0 0.0
    %601 = vmatpush1.msra.mxu0 0.0
    %602 = vmatprep.subr.mxu0 0.0
    %603 = vmatpush1.msra.mxu0 0.0
    %604 = vmatprep.subr.mxu0 0.0
    %605 = vmatpush1.msra.mxu0 0.0
    %606 = vmatprep.subr.mxu0 0.0
    %607 = vmatpush1.msra.mxu0 0.0
    %608 = vmatprep.subr.mxu0 0.0
    %609 = vmatpush1.msra.mxu0 0.0
    %610 = vmatprep.subr.mxu0 0.0
    %611 = vmatpush1.msra.mxu0 0.0
    %612 = vmatprep.subr.mxu0 0.0
    %613 = vmatpush1.msra.mxu0 0.0
    %614 = vmatprep.subr.mxu0 0.0
    %615 = vmatpush1.msra.mxu0 0.0
    %616 = vmatprep.subr.mxu0 0.0
    %617 = vmatpush1.msra.mxu0 0.0
    %618 = vmatprep.subr.mxu0 0.0
    %619 = vmatpush1.msra.mxu0 0.0
    %620 = vmatprep.subr.mxu0 0.0
    %621 = vmatpush1.msra.mxu0 0.0
    %622 = vmatprep.subr.mxu0 0.0
    %623 = vmatpush1.msra.mxu0 0.0
    %624 = vmatprep.subr.mxu0 0.0
    %625 = vmatpush1.msra.mxu0 0.0
    %626 = vmatprep.subr.mxu0 0.0
    %627 = vmatpush1.msra.mxu0 0.0
    %628 = vmatprep.subr.mxu0 0.0
    %629 = vmatpush1.msra.mxu0 0.0
    %630 = vmatprep.subr.mxu0 0.0
    %631 = vmatpush1.msra.mxu0 0.0
    %632 = vmatprep.subr.mxu0 0.0
    %633 = vmatpush1.msra.mxu0 0.0
    %634 = vmatprep.subr.mxu0 0.0
    %635 = vmatpush1.msra.mxu0 0.0
    %636 = vmatprep.subr.mxu0 0.0
    %637 = vmatpush1.msra.mxu0 0.0
    %638 = vmatprep.subr.mxu0 0.0
    %639 = vmatpush1.msra.mxu0 0.0
    %640 = vmatprep.subr.mxu0 0.0
    %641 = vmatpush1.msra.mxu0 0.0
    %642 = vmatprep.subr.mxu0 0.0
    %643 = vmatpush1.msra.mxu0 0.0
    %644 = vmatprep.subr.mxu0 0.0
    %645 = vmatpush1.msra.mxu0 0.0
    %646 = vmatprep.subr.mxu0 0.0
    %647 = vmatpush1.msra.mxu0 0.0
    %648 = vmatprep.mubr.f32.mxu0 0.0
    %649 = vmatmul.mubr.f32.gmra.mrb[0].mxu0 %v579
    %v650 = vpop.f32.mrb[0].mxu0
    %v651 = vadd.f32 0.0, %v650
    %v652 = vpop.f32.mrb[0].mxu0
    %v653 = vadd.f32 0.0, %v652
    %654 = vmatprep.mubr.f32.mxu0 0.0
    %655 = vmatmul.mubr.f32.gmra.mrb[0].mxu0 %v582
    %v656 = vpop.f32.mrb[0].mxu0
    %v657 = vadd.f32 0.0, %v656
    %v658 = vpop.f32.mrb[0].mxu0
    %v659 = vadd.f32 0.0, %v658
    %660 = vdwg.mxu0
    %v661 = vpack.c.bf16 %v657, %v651
    %v662 = vpack.c.bf16 %v659, %v653
    %663 = vset.pattern.permute.xlu0 32
    %664 = vperm.xlu0 %663, %v93
    %v665 = vpop.permute.xlu0 %664
    %667 = vset.pattern.permute.xlu0 32
    %668 = vperm.xlu0 %667, %v94
    %v669 = vpop.permute.xlu0 %668
    %671 = vmatprep.subr.bf16.mxu0 %v206
    %672 = vmatpush1.bf16.msra.mxu0 %v205
    %673 = vmatprep.subr.bf16.mxu0 %v208
    %674 = vmatpush1.bf16.msra.mxu0 %v207
    %675 = vmatprep.subr.bf16.mxu0 %v210
    %676 = vmatpush1.bf16.msra.mxu0 %v209
    %677 = vmatprep.subr.bf16.mxu0 %v212
    %678 = vmatpush1.bf16.msra.mxu0 %v211
    %679 = vmatprep.subr.bf16.mxu0 %v214
    %680 = vmatpush1.bf16.msra.mxu0 %v213
    %681 = vmatprep.subr.bf16.mxu0 %v216
    %682 = vmatpush1.bf16.msra.mxu0 %v215
    %683 = vmatprep.subr.bf16.mxu0 %v218
    %684 = vmatpush1.bf16.msra.mxu0 %v217
    %685 = vmatprep.subr.bf16.mxu0 %v220
    %686 = vmatpush1.bf16.msra.mxu0 %v219
    %687 = vmatprep.subr.bf16.mxu0 %v222
    %688 = vmatpush1.bf16.msra.mxu0 %v221
    %689 = vmatprep.subr.bf16.mxu0 %v224
    %690 = vmatpush1.bf16.msra.mxu0 %v223
    %691 = vmatprep.subr.bf16.mxu0 %v226
    %692 = vmatpush1.bf16.msra.mxu0 %v225
    %693 = vmatprep.subr.bf16.mxu0 %v228
    %694 = vmatpush1.bf16.msra.mxu0 %v227
    %695 = vmatprep.subr.bf16.mxu0 %v230
    %696 = vmatpush1.bf16.msra.mxu0 %v229
    %697 = vmatprep.subr.bf16.mxu0 %v232
    %698 = vmatpush1.bf16.msra.mxu0 %v231
    %699 = vmatprep.subr.bf16.mxu0 %v234
    %700 = vmatpush1.bf16.msra.mxu0 %v233
    %701 = vmatprep.subr.bf16.mxu0 %v236
    %702 = vmatpush1.bf16.msra.mxu0 %v235
    %703 = vmatprep.mubr.bf16.mxu0 %v662
    %704 = vmatmul.mubr.bf16.gmra.mrb[0].mxu0 %v661
    %v705 = vpop.f32.mrb[0].mxu0
    %v706 = vadd.f32 %v665, %v705
    %v707 = vpop.f32.mrb[0].mxu0
    %v708 = vadd.f32 %v665, %v707
    %v709 = vpop.f32.mrb[0].mxu0
    %v710 = vadd.f32 %v669, %v709
    %v711 = vpop.f32.mrb[0].mxu0
    %v712 = vadd.f32 %v669, %v711
    %713 = vdwg.mxu0
    %v714 = vadd.f32 %v706, %v402
    %v715 = vadd.f32 %v708, %v403
    %v716 = vadd.f32 %v710, %v404
    %v717 = vadd.f32 %v712, %v405
    %v718 = vmax.f32 %v714, 0.0
    %v719 = vmax.f32 %v715, 0.0
    %v720 = vmax.f32 %v716, 0.0
    %v721 = vmax.f32 %v717, 0.0
    %v722 = vpack.c.bf16 %v720, %v718
    %v723 = vpack.c.bf16 %v721, %v719
    %724 = vmatprep.subr.bf16.mxu0 %v206
    %725 = vmatpush1.bf16.msra.mxu0 %v205
    %726 = vmatprep.subr.bf16.mxu0 %v208
    %727 = vmatpush1.bf16.msra.mxu0 %v207
    %728 = vmatprep.subr.bf16.mxu0 %v210
    %729 = vmatpush1.bf16.msra.mxu0 %v209
    %730 = vmatprep.subr.bf16.mxu0 %v212
    %731 = vmatpush1.bf16.msra.mxu0 %v211
    %732 = vmatprep.subr.bf16.mxu0 %v214
    %733 = vmatpush1.bf16.msra.mxu0 %v213
    %734 = vmatprep.subr.bf16.mxu0 %v216
    %735 = vmatpush1.bf16.msra.mxu0 %v215
    %736 = vmatprep.subr.bf16.mxu0 %v218
    %737 = vmatpush1.bf16.msra.mxu0 %v217
    %738 = vmatprep.subr.bf16.mxu0 %v220
    %739 = vmatpush1.bf16.msra.mxu0 %v219
    %740 = vmatprep.subr.bf16.mxu0 %v222
    %741 = vmatpush1.bf16.msra.mxu0 %v221
    %742 = vmatprep.subr.bf16.mxu0 %v224
    %743 = vmatpush1.bf16.msra.mxu0 %v223
    %744 = vmatprep.subr.bf16.mxu0 %v226
    %745 = vmatpush1.bf16.msra.mxu0 %v225
    %746 = vmatprep.subr.bf16.mxu0 %v228
    %747 = vmatpush1.bf16.msra.mxu0 %v227
    %748 = vmatprep.subr.bf16.mxu0 %v230
    %749 = vmatpush1.bf16.msra.mxu0 %v229
    %750 = vmatprep.subr.bf16.mxu0 %v232
    %751 = vmatpush1.bf16.msra.mxu0 %v231
    %752 = vmatprep.subr.bf16.mxu0 %v234
    %753 = vmatpush1.bf16.msra.mxu0 %v233
    %754 = vmatprep.subr.bf16.mxu0 %v236
    %755 = vmatpush1.bf16.msra.mxu0 %v235
    %756 = vmatprep.mubr.bf16.mxu0 %v723
    %757 = vmatmul.mubr.bf16.gmra.mrb[0].mxu0 %v722
    %v758 = vpop.f32.mrb[0].mxu0
    %v759 = vadd.f32 0.0, %v758
    %v760 = vpop.f32.mrb[0].mxu0
    %v761 = vadd.f32 0.0, %v760
    %v762 = vpop.f32.mrb[0].mxu0
    %v763 = vadd.f32 0.0, %v762
    %v764 = vpop.f32.mrb[0].mxu0
    %v765 = vadd.f32 0.0, %v764
    %766 = vdwg.mxu0
    %768 = vset.pattern.permute.xlu0 16
    %769 = vperm.xlu0 %768, %v95
    %v770 = vpop.permute.xlu0 %769
    %773 = vset.pattern.permute.xlu0 16
    %774 = vperm.xlu0 %773, %v96
    %v775 = vpop.permute.xlu0 %774
    %778 = vset.pattern.permute.xlu0 16
    %779 = vperm.xlu0 %778, %v97
    %v780 = vpop.permute.xlu0 %779
    %783 = vset.pattern.permute.xlu0 16
    %784 = vperm.xlu0 %783, %v98
    %v785 = vpop.permute.xlu0 %784
    %v787 = vsel %vm471, %v95, 0
    %v789 = vsel %vm471, %v96, 0
    %v791 = vsel %vm471, %v97, 0
    %v793 = vsel %vm471, %v98, 0
    %795 = vmatprep.subr.mxu0 %v761
    %796 = vmatpush1.msra.mxu0 %v759
    %797 = vmatprep.subr.mxu0 %v765
    %798 = vmatpush1.msra.mxu0 %v763
    %799 = vmatprep.subr.mxu0 0.0
    %800 = vmatpush1.msra.mxu0 0.0
    %801 = vmatprep.subr.mxu0 0.0
    %802 = vmatpush1.msra.mxu0 0.0
    %803 = vmatprep.subr.mxu0 0.0
    %804 = vmatpush1.msra.mxu0 0.0
    %805 = vmatprep.subr.mxu0 0.0
    %806 = vmatpush1.msra.mxu0 0.0
    %807 = vmatprep.subr.mxu0 0.0
    %808 = vmatpush1.msra.mxu0 0.0
    %809 = vmatprep.subr.mxu0 0.0
    %810 = vmatpush1.msra.mxu0 0.0
    %811 = vmatprep.subr.mxu0 0.0
    %812 = vmatpush1.msra.mxu0 0.0
    %813 = vmatprep.subr.mxu0 0.0
    %814 = vmatpush1.msra.mxu0 0.0
    %815 = vmatprep.subr.mxu0 0.0
    %816 = vmatpush1.msra.mxu0 0.0
    %817 = vmatprep.subr.mxu0 0.0
    %818 = vmatpush1.msra.mxu0 0.0
    %819 = vmatprep.subr.mxu0 0.0
    %820 = vmatpush1.msra.mxu0 0.0
    %821 = vmatprep.subr.mxu0 0.0
    %822 = vmatpush1.msra.mxu0 0.0
    %823 = vmatprep.subr.mxu0 0.0
    %824 = vmatpush1.msra.mxu0 0.0
    %825 = vmatprep.subr.mxu0 0.0
    %826 = vmatpush1.msra.mxu0 0.0
    %827 = vmatprep.subr.mxu0 0.0
    %828 = vmatpush1.msra.mxu0 0.0
    %829 = vmatprep.subr.mxu0 0.0
    %830 = vmatpush1.msra.mxu0 0.0
    %831 = vmatprep.subr.mxu0 0.0
    %832 = vmatpush1.msra.mxu0 0.0
    %833 = vmatprep.subr.mxu0 0.0
    %834 = vmatpush1.msra.mxu0 0.0
    %835 = vmatprep.subr.mxu0 0.0
    %836 = vmatpush1.msra.mxu0 0.0
    %837 = vmatprep.subr.mxu0 0.0
    %838 = vmatpush1.msra.mxu0 0.0
    %839 = vmatprep.subr.mxu0 0.0
    %840 = vmatpush1.msra.mxu0 0.0
    %841 = vmatprep.subr.mxu0 0.0
    %842 = vmatpush1.msra.mxu0 0.0
    %843 = vmatprep.subr.mxu0 0.0
    %844 = vmatpush1.msra.mxu0 0.0
    %845 = vmatprep.subr.mxu0 0.0
    %846 = vmatpush1.msra.mxu0 0.0
    %847 = vmatprep.subr.mxu0 0.0
    %848 = vmatpush1.msra.mxu0 0.0
    %849 = vmatprep.subr.mxu0 0.0
    %850 = vmatpush1.msra.mxu0 0.0
    %851 = vmatprep.subr.mxu0 0.0
    %852 = vmatpush1.msra.mxu0 0.0
    %853 = vmatprep.subr.mxu0 0.0
    %854 = vmatpush1.msra.mxu0 0.0
    %855 = vmatprep.subr.mxu0 0.0
    %856 = vmatpush1.msra.mxu0 0.0
    %857 = vmatprep.subr.mxu0 0.0
    %858 = vmatpush1.msra.mxu0 0.0
    %859 = vmatprep.mubr.f32.mxu0 0.0
    %860 = vmatmul.mubr.f32.gmra.mrb[0].mxu0 %v787
    %v861 = vpop.f32.mrb[0].mxu0
    %v862 = vadd.f32 %v770, %v861
    %v863 = vpop.f32.mrb[0].mxu0
    %v864 = vadd.f32 %v770, %v863
    %865 = vmatprep.mubr.f32.mxu0 0.0
    %866 = vmatmul.mubr.f32.gmra.mrb[0].mxu0 %v789
    %v867 = vpop.f32.mrb[0].mxu0
    %v868 = vadd.f32 %v775, %v867
    %v869 = vpop.f32.mrb[0].mxu0
    %v870 = vadd.f32 %v775, %v869
    %871 = vmatprep.mubr.f32.mxu0 0.0
    %872 = vmatmul.mubr.f32.gmra.mrb[0].mxu0 %v791
    %v873 = vpop.f32.mrb[0].mxu0
    %v874 = vadd.f32 %v780, %v873
    %v875 = vpop.f32.mrb[0].mxu0
    %v876 = vadd.f32 %v780, %v875
    %877 = vmatprep.mubr.f32.mxu0 0.0
    %878 = vmatmul.mubr.f32.gmra.mrb[0].mxu0 %v793
    %v879 = vpop.f32.mrb[0].mxu0
    %v880 = vadd.f32 %v785, %v879
    %v881 = vpop.f32.mrb[0].mxu0
    %v882 = vadd.f32 %v785, %v881
    %883 = vdwg.mxu0
    %v884 = vmax.f32 %v862, 0.0
    %v885 = vmax.f32 %v864, 0.0
    %v886 = vmax.f32 %v868, 0.0
    %v887 = vmax.f32 %v870, 0.0
    %v888 = vmax.f32 %v874, 0.0
    %v889 = vmax.f32 %v876, 0.0
    %v890 = vmax.f32 %v880, 0.0
    %v891 = vmax.f32 %v882, 0.0
    %v893 = vsel %vm577, %v99, 0
    %v896 = vsel %vm577, %v100, 0
    %898 = vmatprep.subr.mxu0 %v885
    %899 = vmatpush1.msra.mxu0 %v884
    %900 = vmatprep.subr.mxu0 %v887
    %901 = vmatpush1.msra.mxu0 %v886
    %902 = vmatprep.subr.mxu0 %v889
    %903 = vmatpush1.msra.mxu0 %v888
    %904 = vmatprep.subr.mxu0 %v891
    %905 = vmatpush1.msra.mxu0 %v890
    %906 = vmatprep.subr.mxu0 0.0
    %907 = vmatpush1.msra.mxu0 0.0
    %908 = vmatprep.subr.mxu0 0.0
    %909 = vmatpush1.msra.mxu0 0.0
    %910 = vmatprep.subr.mxu0 0.0
    %911 = vmatpush1.msra.mxu0 0.0
    %912 = vmatprep.subr.mxu0 0.0
    %913 = vmatpush1.msra.mxu0 0.0
    %914 = vmatprep.subr.mxu0 0.0
    %915 = vmatpush1.msra.mxu0 0.0
    %916 = vmatprep.subr.mxu0 0.0
    %917 = vmatpush1.msra.mxu0 0.0
    %918 = vmatprep.subr.mxu0 0.0
    %919 = vmatpush1.msra.mxu0 0.0
    %920 = vmatprep.subr.mxu0 0.0
    %921 = vmatpush1.msra.mxu0 0.0
    %922 = vmatprep.subr.mxu0 0.0
    %923 = vmatpush1.msra.mxu0 0.0
    %924 = vmatprep.subr.mxu0 0.0
    %925 = vmatpush1.msra.mxu0 0.0
    %926 = vmatprep.subr.mxu0 0.0
    %927 = vmatpush1.msra.mxu0 0.0
    %928 = vmatprep.subr.mxu0 0.0
    %929 = vmatpush1.msra.mxu0 0.0
    %930 = vmatprep.subr.mxu0 0.0
    %931 = vmatpush1.msra.mxu0 0.0
    %932 = vmatprep.subr.mxu0 0.0
    %933 = vmatpush1.msra.mxu0 0.0
    %934 = vmatprep.subr.mxu0 0.0
    %935 = vmatpush1.msra.mxu0 0.0
    %936 = vmatprep.subr.mxu0 0.0
    %937 = vmatpush1.msra.mxu0 0.0
    %938 = vmatprep.subr.mxu0 0.0
    %939 = vmatpush1.msra.mxu0 0.0
    %940 = vmatprep.subr.mxu0 0.0
    %941 = vmatpush1.msra.mxu0 0.0
    %942 = vmatprep.subr.mxu0 0.0
    %943 = vmatpush1.msra.mxu0 0.0
    %944 = vmatprep.subr.mxu0 0.0
    %945 = vmatpush1.msra.mxu0 0.0
    %946 = vmatprep.subr.mxu0 0.0
    %947 = vmatpush1.msra.mxu0 0.0
    %948 = vmatprep.subr.mxu0 0.0
    %949 = vmatpush1.msra.mxu0 0.0
    %950 = vmatprep.subr.mxu0 0.0
    %951 = vmatpush1.msra.mxu0 0.0
    %952 = vmatprep.subr.mxu0 0.0
    %953 = vmatpush1.msra.mxu0 0.0
    %954 = vmatprep.subr.mxu0 0.0
    %955 = vmatpush1.msra.mxu0 0.0
    %956 = vmatprep.subr.mxu0 0.0
    %957 = vmatpush1.msra.mxu0 0.0
    %958 = vmatprep.subr.mxu0 0.0
    %959 = vmatpush1.msra.mxu0 0.0
    %960 = vmatprep.subr.mxu0 0.0
    %961 = vmatpush1.msra.mxu0 0.0
    %962 = vmatprep.mubr.f32.mxu0 0.0
    %963 = vmatmul.mubr.f32.gmra.mrb[0].mxu0 %v893
    %v964 = vpop.f32.mrb[0].mxu0
    %v965 = vadd.f32 0.0, %v964
    %v966 = vpop.f32.mrb[0].mxu0
    %v967 = vadd.f32 0.0, %v966
    %968 = vmatprep.mubr.f32.mxu0 0.0
    %969 = vmatmul.mubr.f32.gmra.mrb[0].mxu0 %v896
    %v970 = vpop.f32.mrb[0].mxu0
    %v971 = vadd.f32 0.0, %v970
    %v972 = vpop.f32.mrb[0].mxu0
    %v973 = vadd.f32 0.0, %v972
    %974 = vdwg.mxu0
    %v975 = vpack.c.bf16 %v971, %v965
    %v976 = vpack.c.bf16 %v973, %v967
    %977 = vset.pattern.permute.xlu0 32
    %978 = vperm.xlu0 %977, %v99
    %v979 = vpop.permute.xlu0 %978
    %981 = vset.pattern.permute.xlu0 32
    %982 = vperm.xlu0 %981, %v100
    %v983 = vpop.permute.xlu0 %982
    %985 = vmatprep.subr.bf16.mxu0 %v206
    %986 = vmatpush1.bf16.msra.mxu0 %v205
    %987 = vmatprep.subr.bf16.mxu0 %v208
    %988 = vmatpush1.bf16.msra.mxu0 %v207
    %989 = vmatprep.subr.bf16.mxu0 %v210
    %990 = vmatpush1.bf16.msra.mxu0 %v209
    %991 = vmatprep.subr.bf16.mxu0 %v212
    %992 = vmatpush1.bf16.msra.mxu0 %v211
    %993 = vmatprep.subr.bf16.mxu0 %v214
    %994 = vmatpush1.bf16.msra.mxu0 %v213
    %995 = vmatprep.subr.bf16.mxu0 %v216
    %996 = vmatpush1.bf16.msra.mxu0 %v215
    %997 = vmatprep.subr.bf16.mxu0 %v218
    %998 = vmatpush1.bf16.msra.mxu0 %v217
    %999 = vmatprep.subr.bf16.mxu0 %v220
    %1000 = vmatpush1.bf16.msra.mxu0 %v219
    %1001 = vmatprep.subr.bf16.mxu0 %v222
    %1002 = vmatpush1.bf16.msra.mxu0 %v221
    %1003 = vmatprep.subr.bf16.mxu0 %v224
    %1004 = vmatpush1.bf16.msra.mxu0 %v223
    %1005 = vmatprep.subr.bf16.mxu0 %v226
    %1006 = vmatpush1.bf16.msra.mxu0 %v225
    %1007 = vmatprep.subr.bf16.mxu0 %v228
    %1008 = vmatpush1.bf16.msra.mxu0 %v227
    %1009 = vmatprep.subr.bf16.mxu0 %v230
    %1010 = vmatpush1.bf16.msra.mxu0 %v229
    %1011 = vmatprep.subr.bf16.mxu0 %v232
    %1012 = vmatpush1.bf16.msra.mxu0 %v231
    %1013 = vmatprep.subr.bf16.mxu0 %v234
    %1014 = vmatpush1.bf16.msra.mxu0 %v233
    %1015 = vmatprep.subr.bf16.mxu0 %v236
    %1016 = vmatpush1.bf16.msra.mxu0 %v235
    %1017 = vmatprep.mubr.bf16.mxu0 %v976
    %1018 = vmatmul.mubr.bf16.gmra.mrb[0].mxu0 %v975
    %v1019 = vpop.f32.mrb[0].mxu0
    %v1020 = vadd.f32 %v979, %v1019
    %v1021 = vpop.f32.mrb[0].mxu0
    %v1022 = vadd.f32 %v979, %v1021
    %v1023 = vpop.f32.mrb[0].mxu0
    %v1024 = vadd.f32 %v983, %v1023
    %v1025 = vpop.f32.mrb[0].mxu0
    %v1026 = vadd.f32 %v983, %v1025
    %1027 = vdwg.mxu0
    %v1028 = vadd.f32 %v1020, %v718
    %v1029 = vadd.f32 %v1022, %v719
    %v1030 = vadd.f32 %v1024, %v720
    %v1031 = vadd.f32 %v1026, %v721
    %v1032 = vmax.f32 %v1028, 0.0
    %v1033 = vmax.f32 %v1029, 0.0
    %v1034 = vmax.f32 %v1030, 0.0
    %v1035 = vmax.f32 %v1031, 0.0
    %1036 = vset.pattern.permute.xlu0 40
    %1037 = vperm.xlu0 %1036, %v87
    %v1038 = vpop.permute.xlu0 %1037
    %1040 = vset.pattern.permute.xlu0 40
    %1041 = vperm.xlu0 %1040, %v88
    %v1042 = vpop.permute.xlu0 %1041
    %v1044 = vmul.f32 %v1032, %v1038
    %v1045 = vmul.f32 %v1033, %v1038
    %v1046 = vmul.f32 %v1034, %v1042
    %v1047 = vmul.f32 %v1035, %v1042
    %v1048 = vadd.f32 %v1044, %v1046
    %v1049 = vrot.slane %v1048, 4
    %v1050 = vadd.f32 %v1048, %v1049
    %v1051 = vrot.slane %v1050, 2
    %v1052 = vadd.f32 %v1050, %v1051
    %v1053 = vrot.slane %v1052, 1
    %v1054 = vadd.f32 %v1052, %v1053
    %v1055 = vadd.f32 %v1045, %v1047
    %v1056 = vrot.slane %v1055, 4
    %v1057 = vadd.f32 %v1055, %v1056
    %v1058 = vrot.slane %v1057, 2
    %v1059 = vadd.f32 %v1057, %v1058
    %v1060 = vrot.slane %v1059, 1
    %v1061 = vadd.f32 %v1059, %v1060
    %v1062 = vpack.c.bf16 %v1054, %v1054
    %v1063 = vpack.c.bf16 %v1061, %v1061
    %1065 = vset.pattern.permute.xlu0 41
    %1066 = vperm.xlu0 %1065, %v101
    %v1067 = vpop.permute.xlu0 %1066
    %1069 = vmatprep.subr.bf16.mxu0 %v206
    %1070 = vmatpush1.bf16.msra.mxu0 %v205
    %1071 = vmatprep.subr.bf16.mxu0 %v208
    %1072 = vmatpush1.bf16.msra.mxu0 %v207
    %1073 = vmatprep.subr.bf16.mxu0 %v210
    %1074 = vmatpush1.bf16.msra.mxu0 %v209
    %1075 = vmatprep.subr.bf16.mxu0 %v212
    %1076 = vmatpush1.bf16.msra.mxu0 %v211
    %1077 = vmatprep.subr.bf16.mxu0 %v214
    %1078 = vmatpush1.bf16.msra.mxu0 %v213
    %1079 = vmatprep.subr.bf16.mxu0 %v216
    %1080 = vmatpush1.bf16.msra.mxu0 %v215
    %1081 = vmatprep.subr.bf16.mxu0 %v218
    %1082 = vmatpush1.bf16.msra.mxu0 %v217
    %1083 = vmatprep.subr.bf16.mxu0 %v220
    %1084 = vmatpush1.bf16.msra.mxu0 %v219
    %1085 = vmatprep.subr.bf16.mxu0 %v222
    %1086 = vmatpush1.bf16.msra.mxu0 %v221
    %1087 = vmatprep.subr.bf16.mxu0 %v224
    %1088 = vmatpush1.bf16.msra.mxu0 %v223
    %1089 = vmatprep.subr.bf16.mxu0 %v226
    %1090 = vmatpush1.bf16.msra.mxu0 %v225
    %1091 = vmatprep.subr.bf16.mxu0 %v228
    %1092 = vmatpush1.bf16.msra.mxu0 %v227
    %1093 = vmatprep.subr.bf16.mxu0 %v230
    %1094 = vmatpush1.bf16.msra.mxu0 %v229
    %1095 = vmatprep.subr.bf16.mxu0 %v232
    %1096 = vmatpush1.bf16.msra.mxu0 %v231
    %1097 = vmatprep.subr.bf16.mxu0 %v234
    %1098 = vmatpush1.bf16.msra.mxu0 %v233
    %1099 = vmatprep.subr.bf16.mxu0 %v236
    %1100 = vmatpush1.bf16.msra.mxu0 %v235
    %1101 = vmatprep.mubr.bf16.mxu0 %v1063
    %1102 = vmatmul.mubr.bf16.gmra.mrb[0].mxu0 %v1062
    %v1103 = vpop.f32.mrb[0].mxu0
    %v1104 = vadd.f32 %v1067, %v1103
    %v1105 = vpop.f32.mrb[0].mxu0
    %v1106 = vadd.f32 %v1067, %v1105
    %v1107 = vpop.f32.mrb[0].mxu0
    %v1108 = vpop.f32.mrb[0].mxu0
    %1109 = vdwg.mxu0
    %v1110 = vxor.u32 %v1104, 2147483648
    %v1111 = vxor.u32 %v1106, 2147483648
    %v1112 = vmul.f32 %v1110, 1.442695
    %v1113 = vpow.pop %v1112
    %v1114 = vmul.f32 %v1111, 1.442695
    %v1115 = vpow.pop %v1114
    %v1116 = vadd.f32 %v1113, 1.0
    %v1117 = vadd.f32 %v1115, 1.0
    %v1118 = vrcp.pop %v1116
    %v1119 = vmul.f32 1.0, %v1118
    %v1120 = vrcp.pop %v1117
    %v1121 = vmul.f32 1.0, %v1120
    %v1124 = vcombine.low %v1119, %v1121
    %v1126 = vunpack.c.l.s4 1966171168
    %v1127 = vunpack.c.0.s8 %v1126
    %v1128 = vlaneseq
    %v1129 = vshrl.u32 %v1128, 7
    %v1130 = vsub.s32 %v1127, %v1129
    %v1131 = vrot.slane %v1124, %v1130
    %v1133 = vunpack.c.l.s4 1966171168
    %v1134 = vunpack.c.0.s8 %v1133
    %v1135 = vlaneseq
    %v1136 = vshrl.u32 %v1135, 7
    %v1137 = vsub.s32 %v1134, %v1136
    %v1138 = vrot.slane %v1131, %v1137
    %v1140 = vlaneseq
    %vm1141 = vcmp.ge.s32.totalorder %v1140, 0
    %vm1142 = vcmp.lt.s32.totalorder %v1140, 256
    %vm1143 = vmand %vm1141, %vm1142
    %1144 = vst.msk [vmem:[#allocation8] sm:$0x3] %vm1143, %v1138
    // Predicated region
    $region26: #{tpu_custom_call.1} parent=1 // pred_check
      _
    $region27: #{tpu_custom_call.1} parent=1 // pred_check_branch
      %1146 = sbr.rel (0) target = $region29
    $region28: #{tpu_custom_call.1} parent=1 // pred_region
      %s1148 = ssub.s32 32, 32
      %1149 = vsyncadd [#allocation4], %s1148
      %s1151 = sshll.u32 [#allocation8], 4
      %s1152 = int_to_ptr.vmem [resolvable:$true] %s1151
      %1154 = dma.vmem_to_hbm [thread:$0]  %s1152, 32, %s3, [#allocation4]
    $region29: #{tpu_custom_call.1} parent=1 // pred_fallthru
      _
    // Predicated region
    $region30: #{tpu_custom_call.1} parent=1 // pred_check
      _
    $region31: #{tpu_custom_call.1} parent=1 // pred_check_branch
      %1156 = sbr.rel (0) target = $region33
    $region32: #{tpu_custom_call.1} parent=1 // pred_region
      %1157 = dma.done [#allocation4], 32
    $region33: #{tpu_custom_call.1} parent=1 // pred_fallthru
      _
    %1158 = vsyncpa [#allocation3], 1
    %1159 = vsyncpa [#allocation6], 1
    %1160 = vsyncpa [#allocation4], 1

</llo_original>
